<compile_context>
chip_gen: v5e
topology: v5e:2x2
jax: 0.10.0
libtpu: 0.0.40
codegen_flags: <defaults>
</compile_context>

<pallas_src>
import functools

import numpy as np

import jax
import jax.numpy as jnp
from jax.experimental import pallas as pl
from jax.experimental.pallas import tpu as pltpu

WEIGHTS = (1.0, 0.5, 0.25, 0.125)


def _round_up(v, m):
    return ((v + m - 1) // m) * m


def _vmem_capacity_bytes():
    """Physical VMEM per core (0 if unknown -> conservative v7x settings)."""
    try:
        return int(pltpu.get_tpu_info().vmem_capacity_bytes)
    except Exception:
        return 0


def _anchor_weights(height, width, coefs, for_mxu):
    """Per-scale weighted anchor masks, built host-side.

    for_mxu=True : (HW, 128) f32, column k = coefs[k] at scale-k anchors.
    for_mxu=False: (n_scales, HW) f32, row k  = coefs[k] at scale-k anchors.
    (Scale 0 has no mask and is handled as a plain sum inside the kernel.)
    """
    hw = height * width
    col = np.arange(hw) % width
    row = np.arange(hw) // width
    if for_mxu:
        w = np.zeros((hw, 128), np.float32)
    else:
        w = np.zeros((len(coefs), hw), np.float32)
    for k in range(1, len(coefs)):
        m = 1 << k
        mask = ((col % m) == 0) & ((row % m) == 0)
        if for_mxu:
            w[:, k] = np.where(mask, np.float32(coefs[k]), np.float32(0.0))
        else:
            w[k, :] = np.where(mask, np.float32(coefs[k]), np.float32(0.0))
    return jnp.asarray(w)


def _ms_l1_kernel(x_ref, y_ref, w_ref, out_ref, *, img_w, hw, coef0,
                  n_scales, use_mxu):
    """One NC-tile: weighted partial sums of all 4 scales -> (1, 1, 128) f32."""
    x = x_ref[...]                     # (TILE_NC, HW), input dtype (f32/bf16)
    y = y_ref[...]

    # Scale 0: no mask -> plain f32 L1 sum (VPU adds + one XLU reduce, cheap).
    d0 = jnp.abs(x.astype(jnp.float32) - y.astype(jnp.float32))
    partial = coef0 * jnp.sum(d0)

    if use_mxu:
        wmat = w_ref[...]                                    # (HW, 128) f32
        lane = jax.lax.broadcasted_iota(jnp.int32, (1, 128), 1)
        acc = jnp.zeros((x.shape[0], 128), jnp.float32)

    # Sliding-window max (window 2^k) in the INPUT dtype: max is exact in
    # bf16, and bf16 vregs carry 2x elements on the roll/max critical path.
    mx, my = x, y
    for k in range(1, n_scales):
        s = 1 << (k - 1)                        # widen window 2^(k-1) -> 2^k
        mx = jnp.maximum(mx, pltpu.roll(mx, hw - s, axis=1))           # horiz
        mx = jnp.maximum(mx, pltpu.roll(mx, hw - s * img_w, axis=1))   # vert
        my = jnp.maximum(my, pltpu.roll(my, hw - s, axis=1))
        my = jnp.maximum(my, pltpu.roll(my, hw - s * img_w, axis=1))

        # abs-diff and all accumulation in f32 for parity with the reference.
        d = jnp.abs(mx.astype(jnp.float32) - my.astype(jnp.float32))
        if use_mxu:
            # Masked + weighted reduce over HW on the (otherwise idle) MXU;
            # only column k of the result belongs to this scale.
            res = jnp.dot(d, wmat, preferred_element_type=jnp.float32)
            acc = acc + jnp.where(lane == k, res, 0.0)
        else:
            wk = w_ref[pl.ds(k, 1), :]                        # (1, HW) f32
            partial = partial + jnp.sum(d * wk)

    if use_mxu:
        partial = partial + jnp.sum(acc)       # one tiny (TILE_NC,128) reduce
    out_ref[...] = jnp.broadcast_to(partial, (1, 1, 128)).astype(jnp.float32)


def l1_loss_multi_scale(x, y, *, tile_nc=None, use_mxu_reduce=True):
    """x, y: (N, C, H, W) arrays (f32 or bf16).  Returns scalar f32 loss.

    v5e note: the f32 path there is HBM-bound -- prefer bf16 ingress (cast
    x, y to bf16 at the caller; pooling stays exact) and consider
    use_mxu_reduce=False, since extra MXU f32 passes are not free on v5e.
    """
    N, C, H, W = x.shape
    assert y.shape == x.shape, "input/target shapes must match"
    assert y.dtype == x.dtype, "input/target dtypes must match"
    pool = 1 << (len(WEIGHTS) - 1)
    assert H % pool == 0 and W % pool == 0, "need H, W divisible by 8"

    NC, HW = N * C, H * W
    xr = x.reshape(NC, HW)
    yr = y.reshape(NC, HW)

    # The (HW, 128) MXU weight matrix only pays off while it stays small.
    if use_mxu_reduce and HW * 128 * 4 > (8 << 20):
        use_mxu_reduce = False

    vmem_cap = _vmem_capacity_bytes()
    big_vmem = vmem_cap >= (100 << 20)            # v5e / v6e: 128 MiB VMEM
    vmem_limit_cap = (96 << 20) if big_vmem else (48 << 20)

    # Per-scale weight / element-count coefficients (use the TRUE NC).
    coefs = tuple(float(w) / (NC * (H >> k) * (W >> k))
                  for k, w in enumerate(WEIGHTS))
    wop = _anchor_weights(H, W, coefs, for_mxu=use_mxu_reduce)
    w_bytes = int(wop.size) * 4

    # --- NC tile: multiple of 8 (sublane alignment).  v5e/v6e get ~8 MiB f32
    # tiles (amortize ~0.35 us per grid step); v7x / unknown stays at ~2 MiB.
    if tile_nc is None:
        target_f32_elems = (2 * 1024 * 1024) if big_vmem else (512 * 1024)
        tile_nc = 8 * max(1, target_f32_elems // (8 * HW))
    tile_nc = max(8, (int(tile_nc) // 8) * 8)
    tile_nc = min(tile_nc, _round_up(NC, 8))

    # v7x megacore: keep >= 2 blocks on the 'parallel' axis whenever the 8-row
    # tile floor allows it, so both TensorCores get real work.
    while _round_up(NC, tile_nc) // tile_nc < 2 and tile_nc > 8:
        tile_nc = max(8, ((tile_nc // 2) // 8) * 8)

    # VMEM: 2 inputs x 2 pipeline buffers + ~6 live f32 temps (mx, my, diffs)
    # + the resident weight operand (+slack).  Shrink the tile if needed.
    def _estimate(t):
        in_b = t * HW * xr.dtype.itemsize
        f32_b = t * HW * 4
        return 4 * in_b + 6 * f32_b + 2 * w_bytes + (4 << 20)

    while _estimate(tile_nc) > vmem_limit_cap and tile_nc > 8:
        tile_nc = max(8, ((tile_nc // 2) // 8) * 8)
    est = _estimate(tile_nc)
    if est > vmem_limit_cap:
        # TODO(synk): add a spatial (H, W) tiling path with an 8-pixel halo
        # for very large images (mainly v7x's 64 MiB VMEM); fail loudly now.
        raise ValueError(
            f"working set ~{est >> 20} MiB exceeds the "
            f"{vmem_limit_cap >> 20} MiB VMEM budget; image too large for "
            f"the NC-tiled path")
    vmem_bytes = int(min(vmem_limit_cap, max(32 << 20, est)))

    nc_pad = _round_up(NC, tile_nc)
    num_blocks = nc_pad // tile_nc
    if nc_pad != NC:                    # zero rows contribute exactly 0
        xr = jnp.pad(xr, ((0, nc_pad - NC), (0, 0)))
        yr = jnp.pad(yr, ((0, nc_pad - NC), (0, 0)))

    kernel = functools.partial(_ms_l1_kernel, img_w=W, hw=HW, coef0=coefs[0],
                               n_scales=len(WEIGHTS), use_mxu=use_mxu_reduce)

    if use_mxu_reduce:
        w_spec = pl.BlockSpec((HW, 128), lambda i: (0, 0))      # resident
    else:
        w_spec = pl.BlockSpec((len(WEIGHTS), HW), lambda i: (0, 0))

    partials = pl.pallas_call(
        kernel,
        out_shape=jax.ShapeDtypeStruct((num_blocks, 1, 128), jnp.float32),
        grid=(num_blocks,),
        in_specs=[
            pl.BlockSpec((tile_nc, HW), lambda i: (i, 0)),
            pl.BlockSpec((tile_nc, HW), lambda i: (i, 0)),
            w_spec,
        ],
        out_specs=pl.BlockSpec((1, 1, 128), lambda i: (i, 0, 0)),
        compiler_params=pltpu.CompilerParams(
            dimension_semantics=("parallel",),
            vmem_limit_bytes=vmem_bytes,
        ),
    )(xr, yr, wop)
    return jnp.sum(partials[:, 0, 0])


def _reference_loss(x, y):
    """Pure-JAX reference matching the PyTorch module."""
    x = jnp.asarray(x, jnp.float32)
    y = jnp.asarray(y, jnp.float32)
    loss = jnp.float32(0.0)
    for i, w in enumerate(WEIGHTS):
        loss = loss + jnp.float32(w) * jnp.mean(jnp.abs(x - y))
        if i + 1 < len(WEIGHTS):
            N, C, H, W = x.shape
            x = x.reshape(N, C, H // 2, 2, W // 2, 2).max(axis=(3, 5))
            y = y.reshape(N, C, H // 2, 2, W // 2, 2).max(axis=(3, 5))
    return loss


if __name__ == "__main__":
    key = jax.random.PRNGKey(0)
    k1, k2, k3, k4 = jax.random.split(key, 4)

    # Primary spec shape: N=2, C=4, H=W=16 (NC=8 -> single 8-row block).
    # Tolerance 1e-4: the MXU reduce may use bf16 multiply passes for f32
    # operands on some generations (weights are exact powers of two here).
    x1 = jax.random.normal(k1, (2, 4, 16, 16), dtype=jnp.float32)
    y1 = jax.random.normal(k2, (2, 4, 16, 16), dtype=jnp.float32)
    out1 = jax.block_until_ready(l1_loss_multi_scale(x1, y1))
    ref1 = jax.block_until_ready(_reference_loss(x1, y1))
    assert jnp.allclose(out1, ref1, rtol=1e-4, atol=1e-4), (out1, ref1)

    # Strict-parity pure-VPU reduce path (recommended on v5e): f32 everywhere.
    out1v = jax.block_until_ready(
        l1_loss_multi_scale(x1, y1, use_mxu_reduce=False))
    assert jnp.allclose(out1v, ref1, rtol=1e-5, atol=1e-5), (out1v, ref1)

    # Multi-block streaming path: NC=32.  Auto tile sizing picks 32 rows and
    # then halves to 16 so the 'parallel' axis has 2 blocks (v7x megacore).
    x2 = jax.random.normal(k3, (2, 16, 16, 16), dtype=jnp.float32)
    y2 = jax.random.normal(k4, (2, 16, 16, 16), dtype=jnp.float32)
    ref2 = jax.block_until_ready(_reference_loss(x2, y2))
    out2 = jax.block_until_ready(l1_loss_multi_scale(x2, y2))
    assert jnp.allclose(out2, ref2, rtol=1e-4, atol=1e-4), (out2, ref2)
    out2b = jax.block_until_ready(l1_loss_multi_scale(x2, y2, tile_nc=8))
    assert jnp.allclose(out2b, ref2, rtol=1e-4, atol=1e-4), (out2b, ref2)

    # NC not a multiple of 8 -> exercises zero-padded rows (must add 0).
    x3, y3 = x1[:1, :3], y1[:1, :3]
    out3 = jax.block_until_ready(l1_loss_multi_scale(x3, y3))
    ref3 = jax.block_until_ready(_reference_loss(x3, y3))
    assert jnp.allclose(out3, ref3, rtol=1e-4, atol=1e-4), (out3, ref3)

    print("KERNEL_OK")
</pallas_src>

<mosaic_0001>
module attributes {stable_mosaic.version = 11 : i64} {
  func.func @_ms_l1_kernel(%arg0: i32, %arg1: memref<8x256xf32, #tpu.memory_space<vmem>>, %arg2: memref<8x256xf32, #tpu.memory_space<vmem>>, %arg3: memref<256x128xf32, #tpu.memory_space<vmem>>, %arg4: memref<1x1x128xf32, #tpu.memory_space<vmem>>) attributes {dimension_semantics = [#tpu.dimension_semantics<parallel>], iteration_bounds = array<i64: 1>, scalar_prefetch = 0 : i64, scratch_operands = 0 : i64, tpu.core_type = #tpu.core_type<tc>, window_params = [{transform_indices = @transform_0, window_bounds = array<i64: 8, 256>}, {transform_indices = @transform_1, window_bounds = array<i64: 8, 256>}, {pipeline_mode = #tpu.pipeline_mode<synchronous>, transform_indices = @transform_2, window_bounds = array<i64: 256, 128>}, {transform_indices = @transform_3, window_bounds = array<i64: 1, 1, 128>}]} {
    %c0 = arith.constant 0 : index
    %c0_0 = arith.constant 0 : index
    %0 = vector.load %arg1[%c0, %c0_0] : memref<8x256xf32, #tpu.memory_space<vmem>>, vector<8x256xf32>
    %c0_1 = arith.constant 0 : index
    %c0_2 = arith.constant 0 : index
    %1 = vector.load %arg2[%c0_1, %c0_2] : memref<8x256xf32, #tpu.memory_space<vmem>>, vector<8x256xf32>
    %2 = arith.subf %0, %1 : vector<8x256xf32>
    %3 = math.absf %2 : vector<8x256xf32>
    %4 = vector.shape_cast %3 : vector<8x256xf32> to vector<1x8x256xf32>
    %cst = arith.constant dense<0.000000e+00> : vector<1xf32>
    %5 = vector.multi_reduction <add>, %4, %cst [1, 2] : vector<1x8x256xf32> to vector<1xf32>
    %6 = vector.shape_cast %5 : vector<1xf32> to vector<1x1x1xf32>
    %7 = vector.extract %6[0, 0, 0] : f32 from vector<1x1x1xf32>
    %cst_3 = arith.constant 4.8828125E-4 : f32
    %8 = arith.mulf %cst_3, %7 : f32
    %c0_4 = arith.constant 0 : index
    %c0_5 = arith.constant 0 : index
    %9 = vector.load %arg3[%c0_4, %c0_5] : memref<256x128xf32, #tpu.memory_space<vmem>>, vector<256x128xf32>
    %10 = tpu.iota {dimensions = array<i32: 1>} : vector<1x128xi32>
    %cst_6 = arith.constant 0.000000e+00 : f32
    %11 = vector.broadcast %cst_6 : f32 to vector<8x128xf32>
    %c255_i32 = arith.constant 255 : i32
    %12 = tpu.dynamic_rotate %0 by %c255_i32 dim 1 : vector<8x256xf32>, i32 -> vector<8x256xf32>
    %13 = arith.maximumf %0, %12 : vector<8x256xf32>
    %c240_i32 = arith.constant 240 : i32
    %14 = tpu.dynamic_rotate %13 by %c240_i32 dim 1 : vector<8x256xf32>, i32 -> vector<8x256xf32>
    %15 = arith.maximumf %13, %14 : vector<8x256xf32>
    %c255_i32_7 = arith.constant 255 : i32
    %16 = tpu.dynamic_rotate %1 by %c255_i32_7 dim 1 : vector<8x256xf32>, i32 -> vector<8x256xf32>
    %17 = arith.maximumf %1, %16 : vector<8x256xf32>
    %c240_i32_8 = arith.constant 240 : i32
    %18 = tpu.dynamic_rotate %17 by %c240_i32_8 dim 1 : vector<8x256xf32>, i32 -> vector<8x256xf32>
    %19 = arith.maximumf %17, %18 : vector<8x256xf32>
    %20 = arith.subf %15, %19 : vector<8x256xf32>
    %21 = math.absf %20 : vector<8x256xf32>
    %cst_9 = arith.constant dense<0.000000e+00> : vector<8x128xf32>
    %22 = tpu.matmul %21, %9, %cst_9 {dimension_numbers = #tpu.dot_dimension_numbers<[1], [0], [0], [1], [0, 0, 1, 1], [], []>} : vector<8x256xf32>, vector<256x128xf32>, vector<8x128xf32> -> vector<8x128xf32>
    %c1_i32 = arith.constant 1 : i32
    %23 = vector.broadcast %c1_i32 : i32 to vector<1x128xi32>
    %24 = arith.cmpi eq, %10, %23 : vector<1x128xi32>
    %cst_10 = arith.constant 0.000000e+00 : f32
    %25 = vector.shape_cast %24 : vector<1x128xi1> to vector<1x128xi1>
    %26 = vector.broadcast %25 : vector<1x128xi1> to vector<8x128xi1>
    %27 = vector.broadcast %cst_10 : f32 to vector<8x128xf32>
    %28 = arith.select %26, %22, %27 : vector<8x128xi1>, vector<8x128xf32>
    %29 = arith.addf %11, %28 : vector<8x128xf32>
    %c254_i32 = arith.constant 254 : i32
    %30 = tpu.dynamic_rotate %15 by %c254_i32 dim 1 : vector<8x256xf32>, i32 -> vector<8x256xf32>
    %31 = arith.maximumf %15, %30 : vector<8x256xf32>
    %c224_i32 = arith.constant 224 : i32
    %32 = tpu.dynamic_rotate %31 by %c224_i32 dim 1 : vector<8x256xf32>, i32 -> vector<8x256xf32>
    %33 = arith.maximumf %31, %32 : vector<8x256xf32>
    %c254_i32_11 = arith.constant 254 : i32
    %34 = tpu.dynamic_rotate %19 by %c254_i32_11 dim 1 : vector<8x256xf32>, i32 -> vector<8x256xf32>
    %35 = arith.maximumf %19, %34 : vector<8x256xf32>
    %c224_i32_12 = arith.constant 224 : i32
    %36 = tpu.dynamic_rotate %35 by %c224_i32_12 dim 1 : vector<8x256xf32>, i32 -> vector<8x256xf32>
    %37 = arith.maximumf %35, %36 : vector<8x256xf32>
    %38 = arith.subf %33, %37 : vector<8x256xf32>
    %39 = math.absf %38 : vector<8x256xf32>
    %cst_13 = arith.constant dense<0.000000e+00> : vector<8x128xf32>
    %40 = tpu.matmul %39, %9, %cst_13 {dimension_numbers = #tpu.dot_dimension_numbers<[1], [0], [0], [1], [0, 0, 1, 1], [], []>} : vector<8x256xf32>, vector<256x128xf32>, vector<8x128xf32> -> vector<8x128xf32>
    %c2_i32 = arith.constant 2 : i32
    %41 = vector.broadcast %c2_i32 : i32 to vector<1x128xi32>
    %42 = arith.cmpi eq, %10, %41 : vector<1x128xi32>
    %cst_14 = arith.constant 0.000000e+00 : f32
    %43 = vector.shape_cast %42 : vector<1x128xi1> to vector<1x128xi1>
    %44 = vector.broadcast %43 : vector<1x128xi1> to vector<8x128xi1>
    %45 = vector.broadcast %cst_14 : f32 to vector<8x128xf32>
    %46 = arith.select %44, %40, %45 : vector<8x128xi1>, vector<8x128xf32>
    %47 = arith.addf %29, %46 : vector<8x128xf32>
    %c252_i32 = arith.constant 252 : i32
    %48 = tpu.dynamic_rotate %33 by %c252_i32 dim 1 : vector<8x256xf32>, i32 -> vector<8x256xf32>
    %49 = arith.maximumf %33, %48 : vector<8x256xf32>
    %c192_i32 = arith.constant 192 : i32
    %50 = tpu.dynamic_rotate %49 by %c192_i32 dim 1 : vector<8x256xf32>, i32 -> vector<8x256xf32>
    %51 = arith.maximumf %49, %50 : vector<8x256xf32>
    %c252_i32_15 = arith.constant 252 : i32
    %52 = tpu.dynamic_rotate %37 by %c252_i32_15 dim 1 : vector<8x256xf32>, i32 -> vector<8x256xf32>
    %53 = arith.maximumf %37, %52 : vector<8x256xf32>
    %c192_i32_16 = arith.constant 192 : i32
    %54 = tpu.dynamic_rotate %53 by %c192_i32_16 dim 1 : vector<8x256xf32>, i32 -> vector<8x256xf32>
    %55 = arith.maximumf %53, %54 : vector<8x256xf32>
    %56 = arith.subf %51, %55 : vector<8x256xf32>
    %57 = math.absf %56 : vector<8x256xf32>
    %cst_17 = arith.constant dense<0.000000e+00> : vector<8x128xf32>
    %58 = tpu.matmul %57, %9, %cst_17 {dimension_numbers = #tpu.dot_dimension_numbers<[1], [0], [0], [1], [0, 0, 1, 1], [], []>} : vector<8x256xf32>, vector<256x128xf32>, vector<8x128xf32> -> vector<8x128xf32>
    %c3_i32 = arith.constant 3 : i32
    %59 = vector.broadcast %c3_i32 : i32 to vector<1x128xi32>
    %60 = arith.cmpi eq, %10, %59 : vector<1x128xi32>
    %cst_18 = arith.constant 0.000000e+00 : f32
    %61 = vector.shape_cast %60 : vector<1x128xi1> to vector<1x128xi1>
    %62 = vector.broadcast %61 : vector<1x128xi1> to vector<8x128xi1>
    %63 = vector.broadcast %cst_18 : f32 to vector<8x128xf32>
    %64 = arith.select %62, %58, %63 : vector<8x128xi1>, vector<8x128xf32>
    %65 = arith.addf %47, %64 : vector<8x128xf32>
    %66 = vector.shape_cast %65 : vector<8x128xf32> to vector<1x8x128xf32>
    %cst_19 = arith.constant dense<0.000000e+00> : vector<1xf32>
    %67 = vector.multi_reduction <add>, %66, %cst_19 [1, 2] : vector<1x8x128xf32> to vector<1xf32>
    %68 = vector.shape_cast %67 : vector<1xf32> to vector<1x1x1xf32>
    %69 = vector.extract %68[0, 0, 0] : f32 from vector<1x1x1xf32>
    %70 = arith.addf %8, %69 : f32
    %71 = vector.broadcast %70 : f32 to vector<1x1x128xf32>
    %c0_20 = arith.constant 0 : index
    %c0_21 = arith.constant 0 : index
    %c0_22 = arith.constant 0 : index
    %72 = vector.load %arg4[%c0_20, %c0_21, %c0_22] : memref<1x1x128xf32, #tpu.memory_space<vmem>>, vector<1x1x128xf32>
    tpu.vector_store %arg4[%c0_20, %c0_21, %c0_22], %71 {strides = array<i32>} : memref<1x1x128xf32, #tpu.memory_space<vmem>>, vector<1x1x128xf32>,
    return
  }
  func.func @transform_0(%arg0: i32) -> (i32, i32) {
    %c0_i32 = arith.constant 0 : i32
    %c0_i32_0 = arith.constant 0 : i32
    return %arg0, %c0_i32 : i32, i32
  }
  func.func @transform_1(%arg0: i32) -> (i32, i32) {
    %c0_i32 = arith.constant 0 : i32
    %c0_i32_0 = arith.constant 0 : i32
    return %arg0, %c0_i32 : i32, i32
  }
  func.func @transform_2(%arg0: i32) -> (i32, i32) {
    %c0_i32 = arith.constant 0 : i32
    %c0_i32_0 = arith.constant 0 : i32
    %c0_i32_1 = arith.constant 0 : i32
    return %c0_i32, %c0_i32_0 : i32, i32
  }
  func.func @transform_3(%arg0: i32) -> (i32, i32, i32) {
    %c0_i32 = arith.constant 0 : i32
    %c0_i32_0 = arith.constant 0 : i32
    %c0_i32_1 = arith.constant 0 : i32
    return %arg0, %c0_i32, %c0_i32_0 : i32, i32, i32
  }
}

</mosaic_0001>

<llo_original>
// kernel: tpu_custom_call.1
$region0: #{tpu_custom_call.1}
  #allocation0 [shape = 'u32[]', space=smem, size = 0x4, offset = 0x4, fixed_abs, tag = 'smem constant byte address 0x4 - core index']
  #allocation1 [shape = 'u32[72,128]{1,0:T(1,128)}', space=vmem, size = 0x9000, scoped, tag = 'internal scratch']
  %s0 = inlined_call_operand.hbm [shape: f32[8,256], index: 0, kind: input, shape index: {}]
  %s1 = inlined_call_operand.hbm [shape: f32[8,256], index: 1, kind: input, shape index: {}]
  %s2 = inlined_call_operand.hbm [shape: f32[256,128], index: 2, kind: input, shape index: {}]
  %s3 = inlined_call_operand.hbm [shape: f32[1,1,128], index: 3, kind: output, shape index: {}]
  %s4 = sld [smem:[#allocation0]]
  $region34: #{tpu_custom_call.1} parent=0
    _
  %s6 = ssub.s32 1, %s4
  %s7 = scalar_select 0, %s6, %s4
  $region1: #{tpu_custom_call.1} parent=0
    #allocation2 [shape = 'u8[8192]{0}', space=vmem, size = 0x2000, scoped, tag = 'input window, operand 0, single buffered']
    #allocation3 [shape = 's32[1]{0}', space=sflag, size = 0x4, scoped, tag = 'scoped memory for tpu_custom_call.1']
    #allocation4 [shape = 's32[1]{0}', space=sflag, size = 0x4, scoped, tag = 'scoped memory for tpu_custom_call.1']
    #allocation5 [shape = 'u8[8192]{0}', space=vmem, size = 0x2000, scoped, tag = 'input window, operand 1, single buffered']
    #allocation6 [shape = 's32[1]{0}', space=sflag, size = 0x4, scoped, tag = 'scoped memory for tpu_custom_call.1']
    #allocation7 [shape = 'u8[131072]{0}', space=vmem, size = 0x20000, scoped, tag = 'input window, operand 2, single buffered']
    #allocation8 [shape = 'u8[512]{0}', space=vmem, size = 0x400, scoped, tag = 'output window, operand 0, single buffered']
    %8 = vsyncpa [#allocation3], 0
    %9 = vsyncpa [#allocation6], 0
    %10 = vsyncpa [#allocation4], 0
    // Predicated region
    $region2: #{tpu_custom_call.1} parent=1 // pred_check
      _
    $region3: #{tpu_custom_call.1} parent=1 // pred_check_branch
      %12 = sbr.rel (0) target = $region5
    $region4: #{tpu_custom_call.1} parent=1 // pred_region
      %14 = vsyncadd [#allocation3], 0
      %s16 = sshll.u32 %s0, 4
      %s17 = int_to_ptr.hbm [resolvable:$true] %s16
      %s18 = sshll.u32 [#allocation2], 4
      %s19 = int_to_ptr.vmem [resolvable:$true] %s18
      %21 = dma.hbm_to_vmem [thread:$0]  %s17, 256, %s19, [#allocation3]
    $region5: #{tpu_custom_call.1} parent=1 // pred_fallthru
      _
    // Predicated region
    $region6: #{tpu_custom_call.1} parent=1 // pred_check
      _
    $region7: #{tpu_custom_call.1} parent=1 // pred_check_branch
      %23 = sbr.rel (0) target = $region9
    $region8: #{tpu_custom_call.1} parent=1 // pred_region
      %25 = vsyncadd [#allocation6], 0
      %s27 = sshll.u32 %s1, 4
      %s28 = int_to_ptr.hbm [resolvable:$true] %s27
      %s29 = sshll.u32 [#allocation5], 4
      %s30 = int_to_ptr.vmem [resolvable:$true] %s29
      %32 = dma.hbm_to_vmem [thread:$0]  %s28, 256, %s30, [#allocation6]
    $region9: #{tpu_custom_call.1} parent=1 // pred_fallthru
      _
    // Predicated region
    $region10: #{tpu_custom_call.1} parent=1 // pred_check
      _
    $region11: #{tpu_custom_call.1} parent=1 // pred_check_branch
      %34 = sbr.rel (0) target = $region13
    $region12: #{tpu_custom_call.1} parent=1 // pred_region
      %36 = vsyncadd [#allocation6], 0
      %s37 = sshll.u32 %s2, 4
      %s38 = int_to_ptr.hbm [resolvable:$true] %s37
      %s39 = sshll.u32 [#allocation7], 4
      %s40 = int_to_ptr.vmem [resolvable:$true] %s39
      %45 = dma.hbm_to_vmem [thread:$0]  %s38, 4096, %s40, [#allocation6], 128, 128, 8
    $region13: #{tpu_custom_call.1} parent=1 // pred_fallthru
      _
    // Predicated region
    $region14: #{tpu_custom_call.1} parent=1 // pred_check
      _
    $region15: #{tpu_custom_call.1} parent=1 // pred_check_branch
      %47 = sbr.rel (0) target = $region17
    $region16: #{tpu_custom_call.1} parent=1 // pred_region
      %49 = dma.done [#allocation3], 256
    $region17: #{tpu_custom_call.1} parent=1 // pred_fallthru
      _
    // Predicated region
    $region18: #{tpu_custom_call.1} parent=1 // pred_check
      _
    $region19: #{tpu_custom_call.1} parent=1 // pred_check_branch
      %51 = sbr.rel (0) target = $region21
    $region20: #{tpu_custom_call.1} parent=1 // pred_region
      %53 = dma.done [#allocation6], 256
    $region21: #{tpu_custom_call.1} parent=1 // pred_fallthru
      _
    // Predicated region
    $region22: #{tpu_custom_call.1} parent=1 // pred_check
      _
    $region23: #{tpu_custom_call.1} parent=1 // pred_check_branch
      %55 = sbr.rel (0) target = $region25
    $region24: #{tpu_custom_call.1} parent=1 // pred_region
      %57 = dma.done [#allocation6], 4096
    $region25: #{tpu_custom_call.1} parent=1 // pred_fallthru
      _
    %v58 = vld [vmem:[#allocation2] sm:$0xff]
    %v59 = vld [vmem:[#allocation2 + $0x8] sm:$0xff]
    %v60 = vld [vmem:[#allocation5] sm:$0xff]
    %v61 = vld [vmem:[#allocation5 + $0x8] sm:$0xff]
    %v62 = vsub.f32 %v58, %v60
    %v63 = vsub.f32 %v59, %v61
    %v64 = vand.u32 2147483647, %v62
    %v65 = vand.u32 2147483647, %v63
    %v66 = vadd.f32 %v64, %v65
    %67 = vadd.xlane.f32.xlu0 %v66
    %v68 = vpop.xlane.xlu0 %67
    %v69 = vrot.slane %v68, 4
    %v70 = vadd.f32 %v68, %v69
    %v71 = vrot.slane %v70, 2
    %v72 = vadd.f32 %v70, %v71
    %v73 = vrot.slane %v72, 1
    %v74 = vadd.f32 %v72, %v73
    %s75 = vtos %v74
    %s76 = smul.f32 %s75, 0.00048828125
    %v77 = vld [vmem:[#allocation7] sm:$0xff]
    %v78 = vld [vmem:[#allocation7 + $0x8] sm:$0xff]
    %v79 = vld [vmem:[#allocation7 + $0x10] sm:$0xff]
    %v80 = vld [vmem:[#allocation7 + $0x18] sm:$0xff]
    %v81 = vld [vmem:[#allocation7 + $0x20] sm:$0xff]
    %v82 = vld [vmem:[#allocation7 + $0x28] sm:$0xff]
    %v83 = vld [vmem:[#allocation7 + $0x30] sm:$0xff]
    %v84 = vld [vmem:[#allocation7 + $0x38] sm:$0xff]
    %v85 = vld [vmem:[#allocation7 + $0x40] sm:$0xff]
    %v86 = vld [vmem:[#allocation7 + $0x48] sm:$0xff]
    %v87 = vld [vmem:[#allocation7 + $0x50] sm:$0xff]
    %v88 = vld [vmem:[#allocation7 + $0x58] sm:$0xff]
    %v89 = vld [vmem:[#allocation7 + $0x60] sm:$0xff]
    %v90 = vld [vmem:[#allocation7 + $0x68] sm:$0xff]
    %v91 = vld [vmem:[#allocation7 + $0x70] sm:$0xff]
    %v92 = vld [vmem:[#allocation7 + $0x78] sm:$0xff]
    %v93 = vld [vmem:[#allocation7 + $0x80] sm:$0xff]
    %v94 = vld [vmem:[#allocation7 + $0x88] sm:$0xff]
    %v95 = vld [vmem:[#allocation7 + $0x90] sm:$0xff]
    %v96 = vld [vmem:[#allocation7 + $0x98] sm:$0xff]
    %v97 = vld [vmem:[#allocation7 + $0xa0] sm:$0xff]
    %v98 = vld [vmem:[#allocation7 + $0xa8] sm:$0xff]
    %v99 = vld [vmem:[#allocation7 + $0xb0] sm:$0xff]
    %v100 = vld [vmem:[#allocation7 + $0xb8] sm:$0xff]
    %v101 = vld [vmem:[#allocation7 + $0xc0] sm:$0xff]
    %v102 = vld [vmem:[#allocation7 + $0xc8] sm:$0xff]
    %v103 = vld [vmem:[#allocation7 + $0xd0] sm:$0xff]
    %v104 = vld [vmem:[#allocation7 + $0xd8] sm:$0xff]
    %v105 = vld [vmem:[#allocation7 + $0xe0] sm:$0xff]
    %v106 = vld [vmem:[#allocation7 + $0xe8] sm:$0xff]
    %v107 = vld [vmem:[#allocation7 + $0xf0] sm:$0xff]
    %v108 = vld [vmem:[#allocation7 + $0xf8] sm:$0xff]
    %v109 = vlaneseq
    %v110 = vand.u32 %v109, 127
    %111 = vrot.lane.b32.xlu0 %v58, 127
    %v112 = vpop.permute.xlu0 %111
    %113 = vrot.lane.b32.xlu0 %v59, 127
    %v114 = vpop.permute.xlu0 %113
    %vm115 = vcmp.lt.s32.totalorder %v110, 127
    %v116 = vsel %vm115, %v112, %v114
    %v117 = vsel %vm115, %v114, %v112
    %v118 = vmax.f32 %v58, %v116
    %v119 = vmax.f32 %v59, %v117
    %120 = vrot.lane.b32.xlu0 %v118, 112
    %v121 = vpop.permute.xlu0 %120
    %122 = vrot.lane.b32.xlu0 %v119, 112
    %v123 = vpop.permute.xlu0 %122
    %vm124 = vcmp.lt.s32.totalorder %v110, 112
    %v125 = vsel %vm124, %v121, %v123
    %v126 = vsel %vm124, %v123, %v121
    %v127 = vmax.f32 %v118, %v125
    %v128 = vmax.f32 %v119, %v126
    %129 = vrot.lane.b32.xlu0 %v60, 127
    %v130 = vpop.permute.xlu0 %129
    %131 = vrot.lane.b32.xlu0 %v61, 127
    %v132 = vpop.permute.xlu0 %131
    %v133 = vsel %vm115, %v130, %v132
    %v134 = vsel %vm115, %v132, %v130
    %v135 = vmax.f32 %v60, %v133
    %v136 = vmax.f32 %v61, %v134
    %137 = vrot.lane.b32.xlu0 %v135, 112
    %v138 = vpop.permute.xlu0 %137
    %139 = vrot.lane.b32.xlu0 %v136, 112
    %v140 = vpop.permute.xlu0 %139
    %v141 = vsel %vm124, %v138, %v140
    %v142 = vsel %vm124, %v140, %v138
    %v143 = vmax.f32 %v135, %v141
    %v144 = vmax.f32 %v136, %v142
    %v145 = vsub.f32 %v127, %v143
    %v146 = vsub.f32 %v128, %v144
    %v147 = vand.u32 2147483647, %v145
    %v148 = vand.u32 2147483647, %v146
    %149 = vmatpush.msra.mxu0 %v92
    %150 = vmatpush.msra.mxu0 %v91
    %151 = vmatpush.msra.mxu0 %v90
    %152 = vmatpush.msra.mxu0 %v89
    %153 = vmatpush.msra.mxu0 %v88
    %154 = vmatpush.msra.mxu0 %v87
    %155 = vmatpush.msra.mxu0 %v86
    %156 = vmatpush.msra.mxu0 %v85
    %157 = vmatpush.msra.mxu0 %v84
    %158 = vmatpush.msra.mxu0 %v83
    %159 = vmatpush.msra.mxu0 %v82
    %160 = vmatpush.msra.mxu0 %v81
    %161 = vmatpush.msra.mxu0 %v80
    %162 = vmatpush.msra.mxu0 %v79
    %163 = vmatpush.msra.mxu0 %v78
    %164 = vmatpush.msra.mxu0 %v77
    %165 = vmatmul.f32.gmra.mxu0 %v147
    %v166 = vpop.f32.mrf.mxu0
    %v167 = vadd.f32 0.0, %v166
    %168 = vdwg.mxu0
    %169 = vmatpush.msra.mxu0 %v108
    %170 = vmatpush.msra.mxu0 %v107
    %171 = vmatpush.msra.mxu0 %v106
    %172 = vmatpush.msra.mxu0 %v105
    %173 = vmatpush.msra.mxu0 %v104
    %174 = vmatpush.msra.mxu0 %v103
    %175 = vmatpush.msra.mxu0 %v102
    %176 = vmatpush.msra.mxu0 %v101
    %177 = vmatpush.msra.mxu0 %v100
    %178 = vmatpush.msra.mxu0 %v99
    %179 = vmatpush.msra.mxu0 %v98
    %180 = vmatpush.msra.mxu0 %v97
    %181 = vmatpush.msra.mxu0 %v96
    %182 = vmatpush.msra.mxu0 %v95
    %183 = vmatpush.msra.mxu0 %v94
    %184 = vmatpush.msra.mxu0 %v93
    %185 = vmatmul.f32.gmra.mxu0 %v148
    %v186 = vpop.f32.mrf.mxu0
    %v187 = vadd.f32 %v167, %v186
    %188 = vdwg.mxu0
    %vm189 = vcmp.eq.s32.totalorder %v110, 1
    %v190 = vsel %vm189, 1, 0
    %vm191 = vcmp.eq.s32.totalorder %v190, 1
    %v192 = vsel %vm191, %v187, 0.0
    %v193 = vadd.f32 %v192, 0.0
    %194 = vrot.lane.b32.xlu0 %v127, 126
    %v195 = vpop.permute.xlu0 %194
    %196 = vrot.lane.b32.xlu0 %v128, 126
    %v197 = vpop.permute.xlu0 %196
    %vm198 = vcmp.lt.s32.totalorder %v110, 126
    %v199 = vsel %vm198, %v195, %v197
    %v200 = vsel %vm198, %v197, %v195
    %v201 = vmax.f32 %v127, %v199
    %v202 = vmax.f32 %v128, %v200
    %203 = vrot.lane.b32.xlu0 %v201, 96
    %v204 = vpop.permute.xlu0 %203
    %205 = vrot.lane.b32.xlu0 %v202, 96
    %v206 = vpop.permute.xlu0 %205
    %vm207 = vcmp.lt.s32.totalorder %v110, 96
    %v208 = vsel %vm207, %v204, %v206
    %v209 = vsel %vm207, %v206, %v204
    %v210 = vmax.f32 %v201, %v208
    %v211 = vmax.f32 %v202, %v209
    %212 = vrot.lane.b32.xlu0 %v143, 126
    %v213 = vpop.permute.xlu0 %212
    %214 = vrot.lane.b32.xlu0 %v144, 126
    %v215 = vpop.permute.xlu0 %214
    %v216 = vsel %vm198, %v213, %v215
    %v217 = vsel %vm198, %v215, %v213
    %v218 = vmax.f32 %v143, %v216
    %v219 = vmax.f32 %v144, %v217
    %220 = vrot.lane.b32.xlu0 %v218, 96
    %v221 = vpop.permute.xlu0 %220
    %222 = vrot.lane.b32.xlu0 %v219, 96
    %v223 = vpop.permute.xlu0 %222
    %v224 = vsel %vm207, %v221, %v223
    %v225 = vsel %vm207, %v223, %v221
    %v226 = vmax.f32 %v218, %v224
    %v227 = vmax.f32 %v219, %v225
    %v228 = vsub.f32 %v210, %v226
    %v229 = vsub.f32 %v211, %v227
    %v230 = vand.u32 2147483647, %v228
    %v231 = vand.u32 2147483647, %v229
    %232 = vmatpush.msra.mxu0 %v92
    %233 = vmatpush.msra.mxu0 %v91
    %234 = vmatpush.msra.mxu0 %v90
    %235 = vmatpush.msra.mxu0 %v89
    %236 = vmatpush.msra.mxu0 %v88
    %237 = vmatpush.msra.mxu0 %v87
    %238 = vmatpush.msra.mxu0 %v86
    %239 = vmatpush.msra.mxu0 %v85
    %240 = vmatpush.msra.mxu0 %v84
    %241 = vmatpush.msra.mxu0 %v83
    %242 = vmatpush.msra.mxu0 %v82
    %243 = vmatpush.msra.mxu0 %v81
    %244 = vmatpush.msra.mxu0 %v80
    %245 = vmatpush.msra.mxu0 %v79
    %246 = vmatpush.msra.mxu0 %v78
    %247 = vmatpush.msra.mxu0 %v77
    %248 = vmatmul.f32.gmra.mxu0 %v230
    %v249 = vpop.f32.mrf.mxu0
    %v250 = vadd.f32 0.0, %v249
    %251 = vdwg.mxu0
    %252 = vmatpush.msra.mxu0 %v108
    %253 = vmatpush.msra.mxu0 %v107
    %254 = vmatpush.msra.mxu0 %v106
    %255 = vmatpush.msra.mxu0 %v105
    %256 = vmatpush.msra.mxu0 %v104
    %257 = vmatpush.msra.mxu0 %v103
    %258 = vmatpush.msra.mxu0 %v102
    %259 = vmatpush.msra.mxu0 %v101
    %260 = vmatpush.msra.mxu0 %v100
    %261 = vmatpush.msra.mxu0 %v99
    %262 = vmatpush.msra.mxu0 %v98
    %263 = vmatpush.msra.mxu0 %v97
    %264 = vmatpush.msra.mxu0 %v96
    %265 = vmatpush.msra.mxu0 %v95
    %266 = vmatpush.msra.mxu0 %v94
    %267 = vmatpush.msra.mxu0 %v93
    %268 = vmatmul.f32.gmra.mxu0 %v231
    %v269 = vpop.f32.mrf.mxu0
    %v270 = vadd.f32 %v250, %v269
    %271 = vdwg.mxu0
    %vm272 = vcmp.eq.s32.totalorder %v110, 2
    %v273 = vsel %vm272, 1, 0
    %vm274 = vcmp.eq.s32.totalorder %v273, 1
    %v275 = vsel %vm274, %v270, 0.0
    %v276 = vadd.f32 %v193, %v275
    %277 = vrot.lane.b32.xlu0 %v210, 124
    %v278 = vpop.permute.xlu0 %277
    %279 = vrot.lane.b32.xlu0 %v211, 124
    %v280 = vpop.permute.xlu0 %279
    %vm281 = vcmp.lt.s32.totalorder %v110, 124
    %v282 = vsel %vm281, %v278, %v280
    %v283 = vsel %vm281, %v280, %v278
    %v284 = vmax.f32 %v210, %v282
    %v285 = vmax.f32 %v211, %v283
    %286 = vrot.lane.b32.xlu0 %v284, 64
    %v287 = vpop.permute.xlu0 %286
    %288 = vrot.lane.b32.xlu0 %v285, 64
    %v289 = vpop.permute.xlu0 %288
    %vm290 = vcmp.lt.s32.totalorder %v110, 64
    %v291 = vsel %vm290, %v287, %v289
    %v292 = vsel %vm290, %v289, %v287
    %v293 = vmax.f32 %v284, %v291
    %v294 = vmax.f32 %v285, %v292
    %295 = vrot.lane.b32.xlu0 %v226, 124
    %v296 = vpop.permute.xlu0 %295
    %297 = vrot.lane.b32.xlu0 %v227, 124
    %v298 = vpop.permute.xlu0 %297
    %v299 = vsel %vm281, %v296, %v298
    %v300 = vsel %vm281, %v298, %v296
    %v301 = vmax.f32 %v226, %v299
    %v302 = vmax.f32 %v227, %v300
    %303 = vrot.lane.b32.xlu0 %v301, 64
    %v304 = vpop.permute.xlu0 %303
    %305 = vrot.lane.b32.xlu0 %v302, 64
    %v306 = vpop.permute.xlu0 %305
    %v307 = vsel %vm290, %v304, %v306
    %v308 = vsel %vm290, %v306, %v304
    %v309 = vmax.f32 %v301, %v307
    %v310 = vmax.f32 %v302, %v308
    %v311 = vsub.f32 %v293, %v309
    %v312 = vsub.f32 %v294, %v310
    %v313 = vand.u32 2147483647, %v311
    %v314 = vand.u32 2147483647, %v312
    %315 = vmatpush.msra.mxu0 %v92
    %316 = vmatpush.msra.mxu0 %v91
    %317 = vmatpush.msra.mxu0 %v90
    %318 = vmatpush.msra.mxu0 %v89
    %319 = vmatpush.msra.mxu0 %v88
    %320 = vmatpush.msra.mxu0 %v87
    %321 = vmatpush.msra.mxu0 %v86
    %322 = vmatpush.msra.mxu0 %v85
    %323 = vmatpush.msra.mxu0 %v84
    %324 = vmatpush.msra.mxu0 %v83
    %325 = vmatpush.msra.mxu0 %v82
    %326 = vmatpush.msra.mxu0 %v81
    %327 = vmatpush.msra.mxu0 %v80
    %328 = vmatpush.msra.mxu0 %v79
    %329 = vmatpush.msra.mxu0 %v78
    %330 = vmatpush.msra.mxu0 %v77
    %331 = vmatmul.f32.gmra.mxu0 %v313
    %v332 = vpop.f32.mrf.mxu0
    %v333 = vadd.f32 0.0, %v332
    %334 = vdwg.mxu0
    %335 = vmatpush.msra.mxu0 %v108
    %336 = vmatpush.msra.mxu0 %v107
    %337 = vmatpush.msra.mxu0 %v106
    %338 = vmatpush.msra.mxu0 %v105
    %339 = vmatpush.msra.mxu0 %v104
    %340 = vmatpush.msra.mxu0 %v103
    %341 = vmatpush.msra.mxu0 %v102
    %342 = vmatpush.msra.mxu0 %v101
    %343 = vmatpush.msra.mxu0 %v100
    %344 = vmatpush.msra.mxu0 %v99
    %345 = vmatpush.msra.mxu0 %v98
    %346 = vmatpush.msra.mxu0 %v97
    %347 = vmatpush.msra.mxu0 %v96
    %348 = vmatpush.msra.mxu0 %v95
    %349 = vmatpush.msra.mxu0 %v94
    %350 = vmatpush.msra.mxu0 %v93
    %351 = vmatmul.f32.gmra.mxu0 %v314
    %v352 = vpop.f32.mrf.mxu0
    %v353 = vadd.f32 %v333, %v352
    %354 = vdwg.mxu0
    %vm355 = vcmp.eq.s32.totalorder %v110, 3
    %v356 = vsel %vm355, 1, 0
    %vm357 = vcmp.eq.s32.totalorder %v356, 1
    %v358 = vsel %vm357, %v353, 0.0
    %v359 = vadd.f32 %v276, %v358
    %360 = vadd.xlane.f32.xlu0 %v359
    %v361 = vpop.xlane.xlu0 %360
    %v362 = vrot.slane %v361, 4
    %v363 = vadd.f32 %v361, %v362
    %v364 = vrot.slane %v363, 2
    %v365 = vadd.f32 %v363, %v364
    %v366 = vrot.slane %v365, 1
    %v367 = vadd.f32 %v365, %v366
    %s368 = vtos %v367
    %s369 = sadd.f32 %s76, %s368
    %v370 = vstv %s369
    %371 = vst [vmem:[#allocation8] sm:$0x1] %v370
    // Predicated region
    $region26: #{tpu_custom_call.1} parent=1 // pred_check
      _
    $region27: #{tpu_custom_call.1} parent=1 // pred_check_branch
      %373 = sbr.rel (0) target = $region29
    $region28: #{tpu_custom_call.1} parent=1 // pred_region
      %375 = vsyncadd [#allocation4], 0
      %s377 = sshll.u32 [#allocation8], 4
      %s378 = int_to_ptr.vmem [resolvable:$true] %s377
      %s379 = sshll.u32 %s3, 4
      %s380 = int_to_ptr.hbm [resolvable:$true] %s379
      %382 = dma.vmem_to_hbm [thread:$0]  %s378, 16, %s380, [#allocation4]
    $region29: #{tpu_custom_call.1} parent=1 // pred_fallthru
      _
    // Predicated region
    $region30: #{tpu_custom_call.1} parent=1 // pred_check
      _
    $region31: #{tpu_custom_call.1} parent=1 // pred_check_branch
      %384 = sbr.rel (0) target = $region33
    $region32: #{tpu_custom_call.1} parent=1 // pred_region
      %386 = dma.done [#allocation4], 16
    $region33: #{tpu_custom_call.1} parent=1 // pred_fallthru
      _
    %387 = vsyncpa [#allocation3], 1
    %388 = vsyncpa [#allocation6], 1
    %389 = vsyncpa [#allocation4], 1

</llo_original>
